<compile_context>
chip_gen: v7x
topology: tpu7x:2x2x1
jax: 0.10.0
libtpu: 0.0.40
codegen_flags: <defaults>
</compile_context>

<pallas_src>
import jax
import jax.numpy as jnp
from jax.experimental import pallas as pl
from jax.experimental.pallas import tpu as pltpu


def _copy_kernel(x_ref, o_ref):
    # Pure element-wise pass-through on the VPU.
    o_ref[...] = x_ref[...]


def _alias_noop_kernel(x_ref, o_ref):
    # input_output_aliases={0: 0} makes o_ref the very same HBM buffer as
    # x_ref, so the identity needs no data movement at all.
    del x_ref, o_ref


def _ceil_div(a: int, b: int) -> int:
    return -(-a // b)


_SINGLE_BLOCK_BUDGET = 256 * 1024        # <= 256 KiB padded: one block, no grid
_TARGET_BLOCK_BYTES = 2 * 1024 * 1024    # ~2 MiB of padded data per tile
_NO_COPY_THRESHOLD = 64 * 1024 * 1024    # > 64 MiB: skip the copy entirely


def cnn_forward(x: jax.Array) -> jax.Array:
    """Forward pass of the (identity) CNN, computed via a Pallas TPU kernel."""
    orig_shape = x.shape
    total = x.size
    if total == 0:
        return x  # degenerate empty array: nothing to run a kernel over

    # ---- Lane-dense 2-D view (free reshape of a contiguous array). ----------
    cols = None
    for c in (512, 256, 128):
        if total % c == 0:
            cols = c
            break
    if cols is None:
        # Fall back to the original trailing dim; blocks keep that axis at full
        # extent so the (8,128) divisibility rule never forces padding.
        cols = orig_shape[-1] if x.ndim >= 1 else 1
    rows = total // cols
    x2d = x.reshape(rows, cols)

    # ---- Tile-padded footprint accounting. -----------------------------------
    itemsize = jnp.dtype(x.dtype).itemsize
    # Sub-32-bit dtypes pack along sublanes: minimum non-full-extent row tile.
    sublane_mult = max(8, 32 // max(1, itemsize))     # f32:8, bf16:16, i8/fp8:32
    lanes_padded = _ceil_div(cols, 128) * 128
    bytes_per_row_group = sublane_mult * lanes_padded * itemsize  # 4 KiB/lane-tile
    num_row_groups = _ceil_div(rows, sublane_mult)
    padded_total_bytes = num_row_groups * bytes_per_row_group

    if padded_total_bytes <= _SINGLE_BLOCK_BUDGET:
        # Tiny input (the test case is 8 KiB): one whole-array block, no grid.
        out2d = pl.pallas_call(
            _copy_kernel,
            out_shape=jax.ShapeDtypeStruct((rows, cols), x.dtype),
            input_output_aliases={0: 0},
        )(x2d)

    elif padded_total_bytes > _NO_COPY_THRESHOLD:
        # Huge activation: identity + alias means the output buffer already
        # holds the data — empty body over raw HBM refs, zero HBM traffic.
        out2d = pl.pallas_call(
            _alias_noop_kernel,
            out_shape=jax.ShapeDtypeStruct((rows, cols), x.dtype),
            in_specs=[pl.BlockSpec(memory_space=pl.ANY)],
            out_specs=pl.BlockSpec(memory_space=pl.ANY),
            input_output_aliases={0: 0},
        )(x2d)

    else:
        # Mid-size: row-tiled, pipelined copy.  ~2 MiB padded data per block;
        # in+out double-buffered => <= 8 MiB VMEM, safe on v5e/v6e/v7x defaults.
        groups_per_block = max(1, _TARGET_BLOCK_BYTES // bytes_per_row_group)
        groups_per_block = min(groups_per_block, num_row_groups)
        grid_len = _ceil_div(num_row_groups, groups_per_block)
        # v7x megacore: both TensorCores share the parallel grid, so prefer an
        # even step count to avoid an idle core on the tail (no effect v5e/v6e).
        if grid_len > 1 and grid_len % 2 == 1:
            grid_len += 1
            groups_per_block = max(1, _ceil_div(num_row_groups, grid_len))
        block_rows = min(rows, groups_per_block * sublane_mult)
        grid_len = _ceil_div(rows, block_rows)

        out2d = pl.pallas_call(
            _copy_kernel,
            out_shape=jax.ShapeDtypeStruct((rows, cols), x.dtype),
            grid=(grid_len,),
            in_specs=[pl.BlockSpec((block_rows, cols), lambda i: (i, 0))],
            out_specs=pl.BlockSpec((block_rows, cols), lambda i: (i, 0)),
            input_output_aliases={0: 0},
            compiler_params=pltpu.CompilerParams(
                dimension_semantics=("parallel",)
            ),
        )(x2d)

    return out2d.reshape(orig_shape)


if __name__ == "__main__":
    key = jax.random.PRNGKey(0)
    # NCHW input consistent with a CNN module: batch=2, channels=4, 16x16.
    x = jax.random.normal(key, (2, 4, 16, 16), dtype=jnp.float32)

    y = cnn_forward(x)
    y = jax.block_until_ready(y)

    assert y.shape == x.shape and y.dtype == x.dtype
    assert bool(jnp.all(y == x))
    print("KERNEL_OK")
</pallas_src>

<mosaic_0001>
module attributes {stable_mosaic.version = 11 : i64} {
  func.func @_copy_kernel(%arg0: memref<4x512xf32, #tpu.memory_space<vmem>>, %arg1: memref<4x512xf32, #tpu.memory_space<vmem>>) attributes {dimension_semantics = [], scalar_prefetch = 0 : i64, scratch_operands = 0 : i64, tpu.core_type = #tpu.core_type<tc>} {
    %c0 = arith.constant 0 : index
    %c0_0 = arith.constant 0 : index
    %0 = vector.load %arg0[%c0, %c0_0] : memref<4x512xf32, #tpu.memory_space<vmem>>, vector<4x512xf32>
    %c0_1 = arith.constant 0 : index
    %c0_2 = arith.constant 0 : index
    %1 = vector.load %arg1[%c0_1, %c0_2] : memref<4x512xf32, #tpu.memory_space<vmem>>, vector<4x512xf32>
    tpu.vector_store %arg1[%c0_1, %c0_2], %0 {strides = array<i32>} : memref<4x512xf32, #tpu.memory_space<vmem>>, vector<4x512xf32>,
    return
  }
}

</mosaic_0001>

<llo_original>
// kernel: tpu_custom_call.1
$region0: #{tpu_custom_call.1}
  #allocation0 [shape = 'u32[]', space=smem, size = 0x4, offset = 0x4, fixed_abs, tag = 'smem constant byte address 0x4 - core index']
  #allocation1 [shape = 'u32[144,128]{1,0:T(1,128)}', space=vmem, size = 0x12000, scoped, tag = 'internal scratch']
  %s0 = inlined_call_operand.hbm [shape: f32[4,512], index: 0, kind: input, shape index: {}, may-alias: {0,1}]
  %s1 = inlined_call_operand.hbm [shape: f32[4,512], index: 1, kind: output, shape index: {}, may-alias: {0,1}]
  %s2 = sld [smem:[#allocation0]]
  $region18: #{tpu_custom_call.1} parent=0
    _
  %s4 = ssub.s32 1, %s2
  %s5 = scalar_select 0, %s4, %s2
  $region1: #{tpu_custom_call.1} parent=0
    #allocation2 [shape = 'u8[8192]{0}', space=vmem, size = 0x2000, scoped, tag = 'input window, operand 0, single buffered']
    #allocation3 [shape = 's32[1]{0}', space=sflag, size = 0x4, scoped, tag = 'scoped memory for tpu_custom_call.1']
    #allocation4 [shape = 's32[1]{0}', space=sflag, size = 0x4, scoped, tag = 'scoped memory for tpu_custom_call.1']
    #allocation5 [shape = 'u8[8192]{0}', space=vmem, size = 0x2000, scoped, tag = 'output window, operand 0, single buffered']
    %6 = vsyncpa [#allocation3], 0
    %7 = vsyncpa [#allocation4], 0
    // Predicated region
    $region2: #{tpu_custom_call.1} parent=1 // pred_check
      _
    $region3: #{tpu_custom_call.1} parent=1 // pred_check_branch
      %9 = sbr.rel (0) target = $region5
    $region4: #{tpu_custom_call.1} parent=1 // pred_region
      %s11 = ssub.s32 256, 256
      %12 = vsyncadd [#allocation3], %s11
      %s14 = sshll.u32 [#allocation2], 4
      %s15 = int_to_ptr.vmem [resolvable:$true] %s14
      %17 = dma.hbm_to_vmem [thread:$0]  %s0, 256, %s15, [#allocation3]
    $region5: #{tpu_custom_call.1} parent=1 // pred_fallthru
      _
    // Predicated region
    $region6: #{tpu_custom_call.1} parent=1 // pred_check
      _
    $region7: #{tpu_custom_call.1} parent=1 // pred_check_branch
      %19 = sbr.rel (0) target = $region9
    $region8: #{tpu_custom_call.1} parent=1 // pred_region
      %20 = dma.done [#allocation3], 256
    $region9: #{tpu_custom_call.1} parent=1 // pred_fallthru
      _
    %v21 = vld [vmem:[#allocation2] sm:$0xff]
    %v22 = vld [vmem:[#allocation2 + $0x8] sm:$0xff]
    %23 = vst [vmem:[#allocation5] sm:$0xff] %v21
    %24 = vst [vmem:[#allocation5 + $0x8] sm:$0xff] %v22
    // Predicated region
    $region10: #{tpu_custom_call.1} parent=1 // pred_check
      _
    $region11: #{tpu_custom_call.1} parent=1 // pred_check_branch
      %26 = sbr.rel (0) target = $region13
    $region12: #{tpu_custom_call.1} parent=1 // pred_region
      %s28 = ssub.s32 256, 256
      %29 = vsyncadd [#allocation4], %s28
      %s31 = sshll.u32 [#allocation5], 4
      %s32 = int_to_ptr.vmem [resolvable:$true] %s31
      %34 = dma.vmem_to_hbm [thread:$0]  %s32, 256, %s1, [#allocation4]
    $region13: #{tpu_custom_call.1} parent=1 // pred_fallthru
      _
    // Predicated region
    $region14: #{tpu_custom_call.1} parent=1 // pred_check
      _
    $region15: #{tpu_custom_call.1} parent=1 // pred_check_branch
      %36 = sbr.rel (0) target = $region17
    $region16: #{tpu_custom_call.1} parent=1 // pred_region
      %37 = dma.done [#allocation4], 256
    $region17: #{tpu_custom_call.1} parent=1 // pred_fallthru
      _
    %38 = vsyncpa [#allocation3], 1
    %39 = vsyncpa [#allocation4], 1

</llo_original>
